<compile_context>
chip_gen: v7x
topology: tpu7x:2x2x1
jax: 0.10.0
libtpu: 0.0.40
codegen_flags: <defaults>
</compile_context>

<pallas_src>
import functools

import jax
import jax.numpy as jnp
from jax import lax
from jax.experimental import pallas as pl
from jax.experimental.pallas import tpu as pltpu


def _round_up(n, m):
    return ((n + m - 1) // m) * m


def _discriminator_kernel(x_ref, w1_ref, b1_ref, w2_ref, b2_ref, w3_ref, b3_ref,
                          out_ref, *, ifsigmoid):
    x = x_ref[...]                                   # [TB, x_depth] f32
    x_depth = x.shape[1]

    # ---- layer 1: K = x_depth ----
    if x_depth <= 8:
        # Tiny contraction -> VPU broadcast-FMAs; keep the MXU/XLU free.
        h = b1_ref[...] + x[:, 0:1] * w1_ref[0:1, :]          # [TB, H]
        for d in range(1, x_depth):                            # static unroll
            h = h + x[:, d:d + 1] * w1_ref[d:d + 1, :]
    else:
        # If x_depth ever grows, use the (idle) MXU instead of x_depth lane extracts.
        h = jnp.dot(x, w1_ref[...], preferred_element_type=jnp.float32) + b1_ref[...]
    h = jnp.maximum(h, 0.1 * h)                      # LeakyReLU(0.1): mul + max

    # ---- layer 2: the only real matmul -> MXU, f32 accumulation ----
    w2 = w2_ref[...]                                 # already bf16 if requested (cast once in wrapper)
    h2 = jnp.dot(h.astype(w2.dtype), w2,
                 preferred_element_type=jnp.float32) + b2_ref[...]
    h2 = jnp.maximum(h2, 0.1 * h2)                   # LeakyReLU(0.1)

    # ---- layer 3: contract over H; result is already lane-major [1, TB] ----
    s = lax.dot_general(w3_ref[...], h2,
                        dimension_numbers=(((1,), (1,)), ((), ())),
                        preferred_element_type=jnp.float32) + b3_ref[...]   # [1, TB]

    if ifsigmoid:
        s = 1.0 / (1.0 + jnp.exp(-s))                # exp on EUP; exact reciprocal

    out_ref[...] = s.reshape(out_ref.shape).astype(out_ref.dtype)


def _resident_spec(a):
    """Full-array block with constant index -> stays VMEM-resident across grid
    steps; request single-buffering since the block never changes."""
    nd = a.ndim

    def idx(i):
        return (0,) * nd

    if hasattr(pl, "Buffered"):
        return pl.BlockSpec(a.shape, idx, pipeline_mode=pl.Buffered(1))
    return pl.BlockSpec(a.shape, idx)


def _choose_tiling(B, block_batch, x_depth, H, act_budget_bytes=24 << 20):
    """Pick (TB, n_tiles): large tiles to amortize per-step overhead, capped by a
    VMEM activation budget; batch padded only to 8-row granularity; >= 2 (even)
    tiles for big batches so the 'parallel' axis shards across v7x's 2 TCs."""
    B8 = _round_up(max(B, 1), 8)

    def tile_bytes(tb):   # [TB,H] f32 intermediates + double-buffered x/out tiles
        return 6 * tb * H * 4 + 2 * tb * (x_depth + 1) * 4

    tb_cap = _round_up(max(block_batch, 8), 8)
    while tb_cap > 8 and tile_bytes(tb_cap) > act_budget_bytes:
        tb_cap = _round_up(tb_cap // 2, 8)

    n_tiles = pl.cdiv(B8, tb_cap)
    if B8 >= 1024 and n_tiles % 2 == 1:   # keep megacore-friendly (and >= 2 steps)
        n_tiles += 1
    TB = _round_up(pl.cdiv(B8, n_tiles), 8)
    return TB, n_tiles


def discriminator_forward(x, params, ifsigmoid=True, matmul_dtype=jnp.float32,
                          block_batch=1024):
    """x: [B, x_depth] float32.

    params: w1 [x_depth, H], b1 [1, H], w2 [H, H], b2 [1, H],
            w3 [1, H] (PyTorch [out, in] layout), b3 [1, 1].
    """
    B, x_depth = x.shape
    w1, b1 = params["w1"], params["b1"]
    w2, b2 = params["w2"], params["b2"]
    w3, b3 = params["w3"], params["b3"]
    H = w1.shape[1]

    # bf16 MXU path: cast w2 once here, not per grid step inside the kernel.
    w2 = w2.astype(matmul_dtype)

    TB, n_tiles = _choose_tiling(B, block_batch, x_depth, H)
    B_pad = TB * n_tiles
    if B_pad != B:
        x = jnp.pad(x, ((0, B_pad - B), (0, 0)))

    kernel = functools.partial(_discriminator_kernel, ifsigmoid=ifsigmoid)

    # VMEM budget: single-buffered resident params + double-buffered I/O tiles +
    # [TB,H] intermediates + headroom, clamped below v7x's 64 MiB physical VMEM.
    param_bytes = sum(int(a.size) * a.dtype.itemsize for a in (w1, b1, w2, b2, w3, b3))
    io_bytes = 2 * (TB * x_depth * 4 + TB * 4)
    act_bytes = 6 * TB * H * 4
    vmem_limit = int(min(max(param_bytes + io_bytes + act_bytes + (2 << 20), 8 << 20),
                         48 << 20))

    out = pl.pallas_call(
        kernel,
        out_shape=jax.ShapeDtypeStruct((n_tiles, 1, TB), jnp.float32),
        grid=(n_tiles,),
        in_specs=[pl.BlockSpec((TB, x_depth), lambda i: (i, 0)),
                  _resident_spec(w1), _resident_spec(b1),
                  _resident_spec(w2), _resident_spec(b2),
                  _resident_spec(w3), _resident_spec(b3)],
        out_specs=pl.BlockSpec((1, 1, TB), lambda i: (i, 0, 0)),
        compiler_params=pltpu.CompilerParams(
            dimension_semantics=("parallel",),
            vmem_limit_bytes=vmem_limit),
    )(x, w1, b1, w2, b2, w3, b3)

    # (n_tiles, 1, TB) holds rows in batch order; drop pad rows, restore [B, 1].
    return out.reshape(B_pad, 1)[:B]


def init_params(key, x_depth=2, n_hidden=128):
    """nn.Linear-style init (uniform +/- 1/sqrt(fan_in)).
    w1/w2 stored transposed as [in, out]; w3 kept as [1, H] (= PyTorch [out, in])."""
    k1, k2, k3, k4, k5, k6 = jax.random.split(key, 6)

    def lin(kw, kb, fan_in, fan_out, transpose):
        bound = 1.0 / jnp.sqrt(fan_in)
        shape = (fan_in, fan_out) if transpose else (fan_out, fan_in)
        w = jax.random.uniform(kw, shape, jnp.float32, -bound, bound)
        b = jax.random.uniform(kb, (1, fan_out), jnp.float32, -bound, bound)
        return w, b

    w1, b1 = lin(k1, k2, x_depth, n_hidden, True)
    w2, b2 = lin(k3, k4, n_hidden, n_hidden, True)
    w3, b3 = lin(k5, k6, n_hidden, 1, False)   # [1, H]
    return dict(w1=w1, b1=b1, w2=w2, b2=b2, w3=w3, b3=b3)


def reference_forward(x, p, ifsigmoid=True):
    hp = lax.Precision.HIGHEST
    leaky = lambda t: jnp.where(t > 0, t, 0.1 * t)
    h = leaky(jnp.dot(x, p["w1"], precision=hp) + p["b1"])
    h = leaky(jnp.dot(h, p["w2"], precision=hp) + p["b2"])
    h = jnp.dot(h, p["w3"].T, precision=hp) + p["b3"]
    return jax.nn.sigmoid(h) if ifsigmoid else h


if __name__ == "__main__":
    key = jax.random.PRNGKey(0)
    kx, kp, kx2, kp2 = jax.random.split(key, 4)

    # Small shapes consistent with the module (x_depth=2), scaled-down hidden.
    B, X_DEPTH, N_HIDDEN = 10, 2, 32
    x = jax.random.normal(kx, (B, X_DEPTH), jnp.float32)
    params = init_params(kp, x_depth=X_DEPTH, n_hidden=N_HIDDEN)

    # f32 path, single tile (batch padded only to 8 rows).
    out = jax.block_until_ready(discriminator_forward(x, params))
    ref = reference_forward(x, params)
    assert out.shape == (B, 1)
    assert jnp.allclose(out, ref, atol=2e-5, rtol=1e-5)

    # Multi-tile grid (block_batch=8 -> 2 grid steps) exercises tiling/padding.
    out_tiled = jax.block_until_ready(
        discriminator_forward(x, params, block_batch=8))
    assert jnp.allclose(out_tiled, ref, atol=2e-5, rtol=1e-5)

    # ifsigmoid=False path.
    out_nosig = jax.block_until_ready(
        discriminator_forward(x, params, ifsigmoid=False))
    assert jnp.allclose(out_nosig, reference_forward(x, params, ifsigmoid=False),
                        atol=2e-5, rtol=1e-5)

    # bf16 layer-2 matmul (w2 pre-cast once in the wrapper), looser tolerance.
    out_bf16 = jax.block_until_ready(
        discriminator_forward(x, params, matmul_dtype=jnp.bfloat16))
    assert jnp.allclose(out_bf16, ref, atol=2e-2, rtol=2e-2)

    # Larger ragged batch: >= 2 "parallel" tiles (v7x megacore) + 8-row-only padding.
    B2, H2 = 1100, 64
    x2 = jax.random.normal(kx2, (B2, X_DEPTH), jnp.float32)
    params2 = init_params(kp2, x_depth=X_DEPTH, n_hidden=H2)
    out2 = jax.block_until_ready(discriminator_forward(x2, params2))
    ref2 = reference_forward(x2, params2)
    assert out2.shape == (B2, 1)
    assert jnp.allclose(out2, ref2, atol=1e-4, rtol=1e-4)

    print("KERNEL_OK")
</pallas_src>

<mosaic_0001>
module attributes {stable_mosaic.version = 11 : i64} {
  func.func @_discriminator_kernel(%arg0: i32, %arg1: memref<16x2xf32, #tpu.memory_space<vmem>>, %arg2: memref<2x32xf32, #tpu.memory_space<vmem>>, %arg3: memref<1x32xf32, #tpu.memory_space<vmem>>, %arg4: memref<32x32xf32, #tpu.memory_space<vmem>>, %arg5: memref<1x32xf32, #tpu.memory_space<vmem>>, %arg6: memref<1x32xf32, #tpu.memory_space<vmem>>, %arg7: memref<1x1xf32, #tpu.memory_space<vmem>>, %arg8: memref<1x1x16xf32, #tpu.memory_space<vmem>>) attributes {dimension_semantics = [#tpu.dimension_semantics<parallel>], iteration_bounds = array<i64: 1>, scalar_prefetch = 0 : i64, scratch_operands = 0 : i64, tpu.core_type = #tpu.core_type<tc>, window_params = [{transform_indices = @transform_0, window_bounds = array<i64: 16, 2>}, {pipeline_mode = #tpu.pipeline_mode<synchronous>, transform_indices = @transform_1, window_bounds = array<i64: 2, 32>}, {pipeline_mode = #tpu.pipeline_mode<synchronous>, transform_indices = @transform_2, window_bounds = array<i64: 1, 32>}, {pipeline_mode = #tpu.pipeline_mode<synchronous>, transform_indices = @transform_3, window_bounds = array<i64: 32, 32>}, {pipeline_mode = #tpu.pipeline_mode<synchronous>, transform_indices = @transform_4, window_bounds = array<i64: 1, 32>}, {pipeline_mode = #tpu.pipeline_mode<synchronous>, transform_indices = @transform_5, window_bounds = array<i64: 1, 32>}, {pipeline_mode = #tpu.pipeline_mode<synchronous>, transform_indices = @transform_6, window_bounds = array<i64: 1, 1>}, {transform_indices = @transform_7, window_bounds = array<i64: 1, 1, 16>}]} {
    %c0 = arith.constant 0 : index
    %c0_0 = arith.constant 0 : index
    %0 = vector.load %arg1[%c0, %c0_0] : memref<16x2xf32, #tpu.memory_space<vmem>>, vector<16x2xf32>
    %c0_1 = arith.constant 0 : index
    %c0_2 = arith.constant 0 : index
    %1 = vector.load %arg3[%c0_1, %c0_2] : memref<1x32xf32, #tpu.memory_space<vmem>>, vector<1x32xf32>
    %2 = vector.extract_strided_slice %0 {offsets = [0, 0], sizes = [16, 1], strides = [1, 1]} : vector<16x2xf32> to vector<16x1xf32>
    %c0_3 = arith.constant 0 : index
    %c0_4 = arith.constant 0 : index
    %3 = vector.load %arg2[%c0_3, %c0_4] : memref<2x32xf32, #tpu.memory_space<vmem>>, vector<1x32xf32>
    %4 = vector.broadcast %2 : vector<16x1xf32> to vector<16x32xf32>
    %5 = vector.broadcast %3 : vector<1x32xf32> to vector<16x32xf32>
    %6 = arith.mulf %4, %5 : vector<16x32xf32>
    %7 = vector.broadcast %1 : vector<1x32xf32> to vector<16x32xf32>
    %8 = arith.addf %7, %6 : vector<16x32xf32>
    %9 = vector.extract_strided_slice %0 {offsets = [0, 1], sizes = [16, 1], strides = [1, 1]} : vector<16x2xf32> to vector<16x1xf32>
    %c1 = arith.constant 1 : index
    %c0_5 = arith.constant 0 : index
    %10 = vector.load %arg2[%c1, %c0_5] : memref<2x32xf32, #tpu.memory_space<vmem>>, vector<1x32xf32>
    %11 = vector.broadcast %9 : vector<16x1xf32> to vector<16x32xf32>
    %12 = vector.broadcast %10 : vector<1x32xf32> to vector<16x32xf32>
    %13 = arith.mulf %11, %12 : vector<16x32xf32>
    %14 = arith.addf %8, %13 : vector<16x32xf32>
    %cst = arith.constant 1.000000e-01 : f32
    %15 = vector.broadcast %cst : f32 to vector<16x32xf32>
    %16 = arith.mulf %15, %14 : vector<16x32xf32>
    %17 = arith.maximumf %14, %16 : vector<16x32xf32>
    %c0_6 = arith.constant 0 : index
    %c0_7 = arith.constant 0 : index
    %18 = vector.load %arg4[%c0_6, %c0_7] : memref<32x32xf32, #tpu.memory_space<vmem>>, vector<32x32xf32>
    %cst_8 = arith.constant dense<0.000000e+00> : vector<16x32xf32>
    %19 = tpu.matmul %17, %18, %cst_8 {dimension_numbers = #tpu.dot_dimension_numbers<[1], [0], [0], [1], [0, 0, 1, 1], [], []>} : vector<16x32xf32>, vector<32x32xf32>, vector<16x32xf32> -> vector<16x32xf32>
    %c0_9 = arith.constant 0 : index
    %c0_10 = arith.constant 0 : index
    %20 = vector.load %arg5[%c0_9, %c0_10] : memref<1x32xf32, #tpu.memory_space<vmem>>, vector<1x32xf32>
    %21 = vector.broadcast %20 : vector<1x32xf32> to vector<16x32xf32>
    %22 = arith.addf %19, %21 : vector<16x32xf32>
    %cst_11 = arith.constant 1.000000e-01 : f32
    %23 = vector.broadcast %cst_11 : f32 to vector<16x32xf32>
    %24 = arith.mulf %23, %22 : vector<16x32xf32>
    %25 = arith.maximumf %22, %24 : vector<16x32xf32>
    %c0_12 = arith.constant 0 : index
    %c0_13 = arith.constant 0 : index
    %26 = vector.load %arg6[%c0_12, %c0_13] : memref<1x32xf32, #tpu.memory_space<vmem>>, vector<1x32xf32>
    %cst_14 = arith.constant dense<0.000000e+00> : vector<1x16xf32>
    %27 = tpu.matmul %26, %25, %cst_14 {dimension_numbers = #tpu.dot_dimension_numbers<[1], [1], [0], [0], [0, 0, 1, 0], [], []>} : vector<1x32xf32>, vector<16x32xf32>, vector<1x16xf32> -> vector<1x16xf32>
    %c0_15 = arith.constant 0 : index
    %c0_16 = arith.constant 0 : index
    %28 = vector.load %arg7[%c0_15, %c0_16] : memref<1x1xf32, #tpu.memory_space<vmem>>, vector<1x1xf32>
    %29 = vector.broadcast %28 : vector<1x1xf32> to vector<1x16xf32>
    %30 = arith.addf %27, %29 : vector<1x16xf32>
    %cst_17 = arith.constant 0.000000e+00 : f32
    %31 = vector.broadcast %cst_17 : f32 to vector<1x16xf32>
    %32 = arith.subf %31, %30 : vector<1x16xf32>
    %33 = math.exp %32 : vector<1x16xf32>
    %cst_18 = arith.constant 1.000000e+00 : f32
    %34 = vector.broadcast %cst_18 : f32 to vector<1x16xf32>
    %35 = arith.addf %34, %33 : vector<1x16xf32>
    %cst_19 = arith.constant 1.000000e+00 : f32
    %36 = vector.broadcast %cst_19 : f32 to vector<1x16xf32>
    %37 = arith.divf %36, %35 : vector<1x16xf32>
    %38 = vector.shape_cast %37 : vector<1x16xf32> to vector<1x1x16xf32>
    %c0_20 = arith.constant 0 : index
    %c0_21 = arith.constant 0 : index
    %c0_22 = arith.constant 0 : index
    %39 = vector.load %arg8[%c0_20, %c0_21, %c0_22] : memref<1x1x16xf32, #tpu.memory_space<vmem>>, vector<1x1x16xf32>
    tpu.vector_store %arg8[%c0_20, %c0_21, %c0_22], %38 {strides = array<i32>} : memref<1x1x16xf32, #tpu.memory_space<vmem>>, vector<1x1x16xf32>,
    return
  }
  func.func @transform_0(%arg0: i32) -> (i32, i32) {
    %c0_i32 = arith.constant 0 : i32
    %c0_i32_0 = arith.constant 0 : i32
    return %arg0, %c0_i32 : i32, i32
  }
  func.func @transform_1(%arg0: i32) -> (i32, i32) {
    %c0_i32 = arith.constant 0 : i32
    %c0_i32_0 = arith.constant 0 : i32
    %c0_i32_1 = arith.constant 0 : i32
    return %c0_i32, %c0_i32_0 : i32, i32
  }
  func.func @transform_2(%arg0: i32) -> (i32, i32) {
    %c0_i32 = arith.constant 0 : i32
    %c0_i32_0 = arith.constant 0 : i32
    %c0_i32_1 = arith.constant 0 : i32
    return %c0_i32, %c0_i32_0 : i32, i32
  }
  func.func @transform_3(%arg0: i32) -> (i32, i32) {
    %c0_i32 = arith.constant 0 : i32
    %c0_i32_0 = arith.constant 0 : i32
    %c0_i32_1 = arith.constant 0 : i32
    return %c0_i32, %c0_i32_0 : i32, i32
  }
  func.func @transform_4(%arg0: i32) -> (i32, i32) {
    %c0_i32 = arith.constant 0 : i32
    %c0_i32_0 = arith.constant 0 : i32
    %c0_i32_1 = arith.constant 0 : i32
    return %c0_i32, %c0_i32_0 : i32, i32
  }
  func.func @transform_5(%arg0: i32) -> (i32, i32) {
    %c0_i32 = arith.constant 0 : i32
    %c0_i32_0 = arith.constant 0 : i32
    %c0_i32_1 = arith.constant 0 : i32
    return %c0_i32, %c0_i32_0 : i32, i32
  }
  func.func @transform_6(%arg0: i32) -> (i32, i32) {
    %c0_i32 = arith.constant 0 : i32
    %c0_i32_0 = arith.constant 0 : i32
    %c0_i32_1 = arith.constant 0 : i32
    return %c0_i32, %c0_i32_0 : i32, i32
  }
  func.func @transform_7(%arg0: i32) -> (i32, i32, i32) {
    %c0_i32 = arith.constant 0 : i32
    %c0_i32_0 = arith.constant 0 : i32
    %c0_i32_1 = arith.constant 0 : i32
    return %arg0, %c0_i32, %c0_i32_0 : i32, i32, i32
  }
}

</mosaic_0001>

<llo_original>
// kernel: tpu_custom_call.1
$region0: #{tpu_custom_call.1}
  #allocation0 [shape = 'u32[]', space=smem, size = 0x4, offset = 0x4, fixed_abs, tag = 'smem constant byte address 0x4 - core index']
  #allocation1 [shape = 'u32[144,128]{1,0:T(1,128)}', space=vmem, size = 0x12000, scoped, tag = 'internal scratch']
  #allocation2 [shape = 'f32[1,1]{1,0:T(1,128)S(1)}', space=vmem, size = 0x200, scoped, tag = 'scoped memory for tpu_custom_call.1']
  %s0 = inlined_call_operand.vmem [shape: f32[16,2], index: 0, kind: input, shape index: {}]
  %s1 = inlined_call_operand.hbm [shape: f32[2,32], index: 1, kind: input, shape index: {}]
  %s2 = inlined_call_operand.vmem [shape: f32[1,32], index: 2, kind: input, shape index: {}]
  %s3 = inlined_call_operand.vmem [shape: f32[32,32], index: 3, kind: input, shape index: {}]
  %s4 = inlined_call_operand.vmem [shape: f32[1,32], index: 4, kind: input, shape index: {}]
  %s5 = inlined_call_operand.vmem [shape: f32[1,32], index: 5, kind: input, shape index: {}]
  %s6 = inlined_call_operand.<no memory space> [shape: f32[1,1], index: 6, kind: input, shape index: {}]
  %s7 = inlined_call_operand.hbm [shape: f32[1,1,16], index: 7, kind: output, shape index: {}]
  %s8 = sld [smem:[#allocation0]]
  $region42: #{tpu_custom_call.1} parent=0
    _
  %s10 = ssub.s32 1, %s8
  %s11 = scalar_select 0, %s10, %s8
  %v12 = vstv %s6
  %13 = vst [vmem:[#allocation2] sm:$0x1] %v12
  $region1: #{tpu_custom_call.1} parent=0
    #allocation3 [shape = 'u8[1024]{0}', space=vmem, size = 0x400, scoped, tag = 'input window, operand 1, single buffered']
    #allocation4 [shape = 's32[1]{0}', space=sflag, size = 0x4, scoped, tag = 'scoped memory for tpu_custom_call.1']
    #allocation5 [shape = 's32[1]{0}', space=sflag, size = 0x4, scoped, tag = 'scoped memory for tpu_custom_call.1']
    #allocation6 [shape = 'u8[512]{0}', space=vmem, size = 0x400, scoped, tag = 'output window, operand 0, single buffered']
    %14 = vsyncpa [#allocation4], 0
    %15 = vsyncpa [#allocation5], 0
    // Predicated region
    $region2: #{tpu_custom_call.1} parent=1 // pred_check
      _
    $region3: #{tpu_custom_call.1} parent=1 // pred_check_branch
      %17 = sbr.rel (0) target = $region5
    $region4: #{tpu_custom_call.1} parent=1 // pred_region
      _
    $region5: #{tpu_custom_call.1} parent=1 // pred_fallthru
      _
    // Predicated region
    $region6: #{tpu_custom_call.1} parent=1 // pred_check
      _
    $region7: #{tpu_custom_call.1} parent=1 // pred_check_branch
      %19 = sbr.rel (0) target = $region9
    $region8: #{tpu_custom_call.1} parent=1 // pred_region
      %s21 = ssub.s32 32, 32
      %22 = vsyncadd [#allocation4], %s21
      %s24 = sshll.u32 [#allocation3], 4
      %s25 = int_to_ptr.vmem [resolvable:$true] %s24
      %27 = dma.hbm_to_vmem [thread:$0]  %s1, 32, %s25, [#allocation4]
    $region9: #{tpu_custom_call.1} parent=1 // pred_fallthru
      _
    // Predicated region
    $region10: #{tpu_custom_call.1} parent=1 // pred_check
      _
    $region11: #{tpu_custom_call.1} parent=1 // pred_check_branch
      %29 = sbr.rel (0) target = $region13
    $region12: #{tpu_custom_call.1} parent=1 // pred_region
      _
    $region13: #{tpu_custom_call.1} parent=1 // pred_fallthru
      _
    // Predicated region
    $region14: #{tpu_custom_call.1} parent=1 // pred_check
      _
    $region15: #{tpu_custom_call.1} parent=1 // pred_check_branch
      %31 = sbr.rel (0) target = $region17
    $region16: #{tpu_custom_call.1} parent=1 // pred_region
      _
    $region17: #{tpu_custom_call.1} parent=1 // pred_fallthru
      _
    // Predicated region
    $region18: #{tpu_custom_call.1} parent=1 // pred_check
      _
    $region19: #{tpu_custom_call.1} parent=1 // pred_check_branch
      %33 = sbr.rel (0) target = $region21
    $region20: #{tpu_custom_call.1} parent=1 // pred_region
      _
    $region21: #{tpu_custom_call.1} parent=1 // pred_fallthru
      _
    // Predicated region
    $region22: #{tpu_custom_call.1} parent=1 // pred_check
      _
    $region23: #{tpu_custom_call.1} parent=1 // pred_check_branch
      %35 = sbr.rel (0) target = $region25
    $region24: #{tpu_custom_call.1} parent=1 // pred_region
      _
    $region25: #{tpu_custom_call.1} parent=1 // pred_fallthru
      _
    // Predicated region
    $region26: #{tpu_custom_call.1} parent=1 // pred_check
      _
    $region27: #{tpu_custom_call.1} parent=1 // pred_check_branch
      %37 = sbr.rel (0) target = $region29
    $region28: #{tpu_custom_call.1} parent=1 // pred_region
      _
    $region29: #{tpu_custom_call.1} parent=1 // pred_fallthru
      _
    // Predicated region
    $region30: #{tpu_custom_call.1} parent=1 // pred_check
      _
    $region31: #{tpu_custom_call.1} parent=1 // pred_check_branch
      %39 = sbr.rel (0) target = $region33
    $region32: #{tpu_custom_call.1} parent=1 // pred_region
      %40 = dma.done [#allocation4], 32
    $region33: #{tpu_custom_call.1} parent=1 // pred_fallthru
      _
    %v41 = vld [vmem:[%s0] sm:$0xff]
    %v42 = vld [vmem:[%s0 + $0x8] sm:$0xff]
    %v43 = vld [vmem:[%s2] sm:$0x1]
    %v44 = vld [vmem:[#allocation3] sm:$0x1]
    %46 = vset.pattern.permute.xlu0 0
    %47 = vperm.xlu0 %46, %v41
    %v48 = vpop.permute.xlu0 %47
    %51 = vset.pattern.permute.xlu0 0
    %52 = vperm.xlu0 %51, %v42
    %v53 = vpop.permute.xlu0 %52
    %v55 = vlaneseq
    %v56 = vshrl.u32 %v55, 7
    %v57 = vsub.s32 0, %v56
    %v58 = vrot.slane %v44, %v57
    %v59 = vmul.f32 %v48, %v58
    %v60 = vmul.f32 %v53, %v58
    %v62 = vlaneseq
    %v63 = vshrl.u32 %v62, 7
    %v64 = vsub.s32 0, %v63
    %v65 = vrot.slane %v43, %v64
    %v67 = vadd.f32 %v65, %v59
    %v68 = vadd.f32 %v65, %v60
    %v69 = vld [vmem:[#allocation3 + $0x1] sm:$0x1]
    %70 = vset.pattern.permute.xlu0 1
    %71 = vperm.xlu0 %70, %v41
    %v72 = vpop.permute.xlu0 %71
    %74 = vset.pattern.permute.xlu0 1
    %75 = vperm.xlu0 %74, %v42
    %v76 = vpop.permute.xlu0 %75
    %v78 = vlaneseq
    %v79 = vshrl.u32 %v78, 7
    %v80 = vsub.s32 0, %v79
    %v81 = vrot.slane %v69, %v80
    %v82 = vmul.f32 %v72, %v81
    %v83 = vmul.f32 %v76, %v81
    %v84 = vadd.f32 %v67, %v82
    %v85 = vadd.f32 %v68, %v83
    %v86 = vmul.f32 %v84, 0.1
    %v87 = vmul.f32 %v85, 0.1
    %v88 = vmax.f32 %v84, %v86
    %v89 = vmax.f32 %v85, %v87
    %v90 = vld [vmem:[%s3] sm:$0xff]
    %v91 = vld [vmem:[%s3 + $0x8] sm:$0xff]
    %v92 = vld [vmem:[%s3 + $0x10] sm:$0xff]
    %v93 = vld [vmem:[%s3 + $0x18] sm:$0xff]
    %v94 = vld [vmem:[%s4] sm:$0x1]
    %v96 = vlaneseq
    %v97 = vshrl.u32 %v96, 7
    %v98 = vsub.s32 0, %v97
    %v99 = vrot.slane %v94, %v98
    %vm101 = vcmask 261120
    %v103 = vsel %vm101, %v88, 0
    %v106 = vsel %vm101, %v89, 0
    %108 = vmatprep.subr.mxu0 0.0
    %109 = vmatpush1.msra.mxu0 %v90
    %110 = vmatprep.subr.mxu0 0.0
    %111 = vmatpush1.msra.mxu0 %v91
    %112 = vmatprep.subr.mxu0 0.0
    %113 = vmatpush1.msra.mxu0 %v92
    %114 = vmatprep.subr.mxu0 0.0
    %115 = vmatpush1.msra.mxu0 %v93
    %116 = vmatprep.subr.mxu0 0.0
    %117 = vmatpush1.msra.mxu0 0.0
    %118 = vmatprep.subr.mxu0 0.0
    %119 = vmatpush1.msra.mxu0 0.0
    %120 = vmatprep.subr.mxu0 0.0
    %121 = vmatpush1.msra.mxu0 0.0
    %122 = vmatprep.subr.mxu0 0.0
    %123 = vmatpush1.msra.mxu0 0.0
    %124 = vmatprep.subr.mxu0 0.0
    %125 = vmatpush1.msra.mxu0 0.0
    %126 = vmatprep.subr.mxu0 0.0
    %127 = vmatpush1.msra.mxu0 0.0
    %128 = vmatprep.subr.mxu0 0.0
    %129 = vmatpush1.msra.mxu0 0.0
    %130 = vmatprep.subr.mxu0 0.0
    %131 = vmatpush1.msra.mxu0 0.0
    %132 = vmatprep.subr.mxu0 0.0
    %133 = vmatpush1.msra.mxu0 0.0
    %134 = vmatprep.subr.mxu0 0.0
    %135 = vmatpush1.msra.mxu0 0.0
    %136 = vmatprep.subr.mxu0 0.0
    %137 = vmatpush1.msra.mxu0 0.0
    %138 = vmatprep.subr.mxu0 0.0
    %139 = vmatpush1.msra.mxu0 0.0
    %140 = vmatprep.subr.mxu0 0.0
    %141 = vmatpush1.msra.mxu0 0.0
    %142 = vmatprep.subr.mxu0 0.0
    %143 = vmatpush1.msra.mxu0 0.0
    %144 = vmatprep.subr.mxu0 0.0
    %145 = vmatpush1.msra.mxu0 0.0
    %146 = vmatprep.subr.mxu0 0.0
    %147 = vmatpush1.msra.mxu0 0.0
    %148 = vmatprep.subr.mxu0 0.0
    %149 = vmatpush1.msra.mxu0 0.0
    %150 = vmatprep.subr.mxu0 0.0
    %151 = vmatpush1.msra.mxu0 0.0
    %152 = vmatprep.subr.mxu0 0.0
    %153 = vmatpush1.msra.mxu0 0.0
    %154 = vmatprep.subr.mxu0 0.0
    %155 = vmatpush1.msra.mxu0 0.0
    %156 = vmatprep.subr.mxu0 0.0
    %157 = vmatpush1.msra.mxu0 0.0
    %158 = vmatprep.subr.mxu0 0.0
    %159 = vmatpush1.msra.mxu0 0.0
    %160 = vmatprep.subr.mxu0 0.0
    %161 = vmatpush1.msra.mxu0 0.0
    %162 = vmatprep.subr.mxu0 0.0
    %163 = vmatpush1.msra.mxu0 0.0
    %164 = vmatprep.subr.mxu0 0.0
    %165 = vmatpush1.msra.mxu0 0.0
    %166 = vmatprep.subr.mxu0 0.0
    %167 = vmatpush1.msra.mxu0 0.0
    %168 = vmatprep.subr.mxu0 0.0
    %169 = vmatpush1.msra.mxu0 0.0
    %170 = vmatprep.subr.mxu0 0.0
    %171 = vmatpush1.msra.mxu0 0.0
    %172 = vmatprep.mubr.f32.mxu0 0.0
    %173 = vmatmul.mubr.f32.gmra.mrb[0].mxu0 %v103
    %v174 = vpop.f32.mrb[0].mxu0
    %v175 = vadd.f32 %v99, %v174
    %v176 = vpop.f32.mrb[0].mxu0
    %177 = vmatprep.mubr.f32.mxu0 0.0
    %178 = vmatmul.mubr.f32.gmra.mrb[0].mxu0 %v106
    %v179 = vpop.f32.mrb[0].mxu0
    %v180 = vadd.f32 %v99, %v179
    %v181 = vpop.f32.mrb[0].mxu0
    %182 = vdwg.mxu0
    %v183 = vmul.f32 %v175, 0.1
    %v184 = vmul.f32 %v180, 0.1
    %v185 = vmax.f32 %v175, %v183
    %v186 = vmax.f32 %v180, %v184
    %v187 = vld [vmem:[%s5] sm:$0x1]
    %v188 = vld [vmem:[#allocation2] sm:$0x1]
    %190 = vset.pattern.permute.xlu0 0
    %191 = vperm.xlu0 %190, %v188
    %v192 = vpop.permute.xlu0 %191
    %v194 = vlaneseq
    %v195 = vshrl.u32 %v194, 7
    %v196 = vsub.s32 0, %v195
    %v197 = vrot.slane %v192, %v196
    %v199 = vsel %vm101, %v187, 0
    %v202 = vsel %vm101, %v185, 0
    %v205 = vsel %vm101, %v186, 0
    %207 = vmatprep.subr.mxu0 0.0
    %208 = vmatpush1.xpose.msra.mxu0 %v202
    %209 = vmatprep.subr.mxu0 0.0
    %210 = vmatpush1.xpose.msra.mxu0 %v205
    %211 = vmatprep.subr.mxu0 0.0
    %212 = vmatpush1.xpose.msra.mxu0 0.0
    %213 = vmatprep.subr.mxu0 0.0
    %214 = vmatpush1.xpose.msra.mxu0 0.0
    %215 = vmatprep.subr.mxu0 0.0
    %216 = vmatpush1.xpose.msra.mxu0 0.0
    %217 = vmatprep.subr.mxu0 0.0
    %218 = vmatpush1.xpose.msra.mxu0 0.0
    %219 = vmatprep.subr.mxu0 0.0
    %220 = vmatpush1.xpose.msra.mxu0 0.0
    %221 = vmatprep.subr.mxu0 0.0
    %222 = vmatpush1.xpose.msra.mxu0 0.0
    %223 = vmatprep.subr.mxu0 0.0
    %224 = vmatpush1.xpose.msra.mxu0 0.0
    %225 = vmatprep.subr.mxu0 0.0
    %226 = vmatpush1.xpose.msra.mxu0 0.0
    %227 = vmatprep.subr.mxu0 0.0
    %228 = vmatpush1.xpose.msra.mxu0 0.0
    %229 = vmatprep.subr.mxu0 0.0
    %230 = vmatpush1.xpose.msra.mxu0 0.0
    %231 = vmatprep.subr.mxu0 0.0
    %232 = vmatpush1.xpose.msra.mxu0 0.0
    %233 = vmatprep.subr.mxu0 0.0
    %234 = vmatpush1.xpose.msra.mxu0 0.0
    %235 = vmatprep.subr.mxu0 0.0
    %236 = vmatpush1.xpose.msra.mxu0 0.0
    %237 = vmatprep.subr.mxu0 0.0
    %238 = vmatpush1.xpose.msra.mxu0 0.0
    %239 = vmatprep.subr.mxu0 0.0
    %240 = vmatpush1.xpose.msra.mxu0 0.0
    %241 = vmatprep.subr.mxu0 0.0
    %242 = vmatpush1.xpose.msra.mxu0 0.0
    %243 = vmatprep.subr.mxu0 0.0
    %244 = vmatpush1.xpose.msra.mxu0 0.0
    %245 = vmatprep.subr.mxu0 0.0
    %246 = vmatpush1.xpose.msra.mxu0 0.0
    %247 = vmatprep.subr.mxu0 0.0
    %248 = vmatpush1.xpose.msra.mxu0 0.0
    %249 = vmatprep.subr.mxu0 0.0
    %250 = vmatpush1.xpose.msra.mxu0 0.0
    %251 = vmatprep.subr.mxu0 0.0
    %252 = vmatpush1.xpose.msra.mxu0 0.0
    %253 = vmatprep.subr.mxu0 0.0
    %254 = vmatpush1.xpose.msra.mxu0 0.0
    %255 = vmatprep.subr.mxu0 0.0
    %256 = vmatpush1.xpose.msra.mxu0 0.0
    %257 = vmatprep.subr.mxu0 0.0
    %258 = vmatpush1.xpose.msra.mxu0 0.0
    %259 = vmatprep.subr.mxu0 0.0
    %260 = vmatpush1.xpose.msra.mxu0 0.0
    %261 = vmatprep.subr.mxu0 0.0
    %262 = vmatpush1.xpose.msra.mxu0 0.0
    %263 = vmatprep.subr.mxu0 0.0
    %264 = vmatpush1.xpose.msra.mxu0 0.0
    %265 = vmatprep.subr.mxu0 0.0
    %266 = vmatpush1.xpose.msra.mxu0 0.0
    %267 = vmatprep.subr.mxu0 0.0
    %268 = vmatpush1.xpose.msra.mxu0 0.0
    %269 = vmatprep.subr.mxu0 0.0
    %270 = vmatpush1.xpose.msra.mxu0 0.0
    %271 = vmatprep.mubr.f32.mxu0 0.0
    %272 = vmatmul.mubr.f32.gmra.mrb[0].mxu0 %v199
    %v273 = vpop.f32.mrb[0].mxu0
    %v274 = vadd.f32 %v197, %v273
    %v275 = vpop.f32.mrb[0].mxu0
    %276 = vdwg.mxu0
    %v277 = vsub.f32 0.0, %v274
    %v278 = vmul.f32 %v277, 1.442695
    %v279 = vpow.pop %v278
    %v280 = vadd.f32 %v279, 1.0
    %v281 = vrcp.pop %v280
    %v282 = vmul.f32 1.0, %v281
    %vm283 = vcmask 122880
    %284 = vst.msk [vmem:[#allocation6] sm:$0x1] %vm283, %v282
    // Predicated region
    $region34: #{tpu_custom_call.1} parent=1 // pred_check
      _
    $region35: #{tpu_custom_call.1} parent=1 // pred_check_branch
      %286 = sbr.rel (0) target = $region37
    $region36: #{tpu_custom_call.1} parent=1 // pred_region
      %s288 = ssub.s32 16, 16
      %289 = vsyncadd [#allocation5], %s288
      %s291 = sshll.u32 [#allocation6], 4
      %s292 = int_to_ptr.vmem [resolvable:$true] %s291
      %294 = dma.vmem_to_hbm [thread:$0]  %s292, 16, %s7, [#allocation5]
    $region37: #{tpu_custom_call.1} parent=1 // pred_fallthru
      _
    // Predicated region
    $region38: #{tpu_custom_call.1} parent=1 // pred_check
      _
    $region39: #{tpu_custom_call.1} parent=1 // pred_check_branch
      %296 = sbr.rel (0) target = $region41
    $region40: #{tpu_custom_call.1} parent=1 // pred_region
      %297 = dma.done [#allocation5], 16
    $region41: #{tpu_custom_call.1} parent=1 // pred_fallthru
      _
    %298 = vsyncpa [#allocation4], 1
    %299 = vsyncpa [#allocation5], 1

</llo_original>
